<compile_context>
chip_gen: v6e
topology: v6e:2x2x1
jax: 0.10.0
libtpu: 0.0.40
codegen_flags: <defaults>
</compile_context>

<pallas_src>
import jax
import jax.numpy as jnp
from jax.experimental import pallas as pl
from jax.experimental.pallas import tpu as pltpu


def _round_up(v, m):
    return ((v + m - 1) // m) * m


def _sublane(dtype):
    return {4: 8, 2: 16, 1: 32}.get(jnp.dtype(dtype).itemsize, 8)


def _down_kernel_scaled(x_ref, p_ref, s_ref, o_ref):
    """One row-block (training mode).

    x_ref: (RB, L)  each row holds a 2G-row band of one channel (L = 2*G*W)
    p_ref: (L, J)   block-diagonal 0/0.25 pairing matrix (1/4 pool factor folded in)
    s_ref: (RB, 1)  per-row Dropout2d channel scale (lane-broadcast column)
    o_ref: (RB, J)  pooled + dropout-scaled, lane-dense output (J = G*W2)
    """
    pooled = jnp.dot(x_ref[...], p_ref[...], preferred_element_type=jnp.float32)
    o_ref[...] = (pooled * s_ref[...]).astype(o_ref.dtype)


def _down_kernel_plain(x_ref, p_ref, o_ref):
    """Eval mode / p == 0: no dropout-scale input stream at all."""
    pooled = jnp.dot(x_ref[...], p_ref[...], preferred_element_type=jnp.float32)
    o_ref[...] = pooled.astype(o_ref.dtype)


def _pick_group(H2, W2):
    """Pooled rows packed per kernel row.  Aim for G*W2 >= 128 (lane-dense
    stores), with G a divisor of H2 and capped at 2x the minimum so the MXU
    pairing-matmul stays cheap."""
    if W2 >= 128:
        return 1
    target = -(-128 // W2)                       # ceil(128 / W2)
    divs = [d for d in range(1, H2 + 1) if H2 % d == 0]
    cands = [d for d in divs if d >= target]
    if cands and min(cands) <= 2 * target:
        return min(cands)
    return max(d for d in divs if d <= target)   # best-effort (still correct)


def _pick_rows_per_block(R, rb_target, sub):
    """Rows per grid block.  Prefer a divisor of R that is a sublane multiple;
    otherwise pad R (one extra HBM copy) so awkward / prime R never collapses
    to tiny blocks and per-step pipeline overhead."""
    rb_target = max(sub, min(R, rb_target))
    if R <= rb_target:
        return R, R                              # single full-extent block
    best = 0
    for d in range(rb_target, 0, -1):
        if R % d == 0 and d % sub == 0:
            best = d
            break
    if best * 2 >= rb_target:
        return best, R
    rb = max(sub, (rb_target // sub) * sub)
    return rb, pl.cdiv(R, rb) * rb


def down_forward(x, drop_rate, key, training=True, block_bytes=4 * 1024 * 1024):
    """Pallas forward of `Down`: AvgPool2d((2,2)) then Dropout2d(p=drop_rate).

    x: (N, C, H, W) float32 / bfloat16.  Returns (N, C, H//2, W//2).
    block_bytes ~ target padded input-block size (4 MiB default; 2-3 MiB is
    plenty on v5e, 4-8 MiB pays off on v7x's faster HBM).
    """
    N, C, H, W = x.shape
    assert H % 2 == 0 and W % 2 == 0, "AvgPool2d((2,2)) needs even H and W"
    H2, W2 = H // 2, W // 2
    NC = N * C
    dtype = x.dtype
    itemsize = jnp.dtype(dtype).itemsize
    sub = _sublane(dtype)

    # ---- lane-dense grouping: G pooled rows per kernel row ----
    G = _pick_group(H2, W2)
    HG = H2 // G              # kernel rows per channel
    L = 2 * G * W             # input lanes per kernel row (a 2G-row band)
    J = G * W2                # output lanes per kernel row
    R = NC * HG               # total kernel rows

    # Free reshape only: (N, C, H, W) -> (R, L).  Row c*HG + r, lane l holds
    # x[c, r*2G + l // W, l % W].
    xf = x.reshape(R, L)

    # Block-diagonal pairing matrix: out[g*W2 + j2] collects the four window
    # elements (rows 2g, 2g+1; cols 2*j2, 2*j2+1) of group g, each weighted by
    # the folded-in 1/4 averaging factor.
    l_idx = jnp.arange(L)
    j_idx = jnp.arange(J)
    same_group = (l_idx[:, None] // (2 * W)) == (j_idx[None, :] // W2)
    same_pair = ((l_idx[:, None] % W) // 2) == (j_idx[None, :] % W2)
    p_mat = jnp.where(same_group & same_pair, 0.25, 0.0).astype(dtype)

    use_scale = bool(training) and float(drop_rate) > 0.0

    # ---- row blocking from (8,128)-padded VMEM sizes ----
    l_pad = _round_up(L, 128)
    j_pad = _round_up(J, 128)
    rb_target = max(1, block_bytes // (l_pad * itemsize))
    RB, Rp = _pick_rows_per_block(R, rb_target, sub)
    NB = Rp // RB
    if Rp != R:                               # one-off copy only for awkward R
        xf = jnp.pad(xf, ((0, Rp - R), (0, 0)))

    # Explicit VMEM budget: double-buffered in/out/scale/pairing blocks +
    # f32 pooled temporary + slack (so the 16/32 MiB scoped default never
    # silently gates double buffering).
    rb_pad = _round_up(RB, sub)
    rb_pad8 = _round_up(RB, 8)
    vmem_bytes = (2 * rb_pad * l_pad * itemsize              # x blocks
                  + 2 * rb_pad * j_pad * itemsize            # out blocks
                  + 2 * _round_up(L, sub) * j_pad * itemsize  # pairing matrix
                  + rb_pad8 * j_pad * 4                      # f32 pooled temp
                  + (2 * rb_pad8 * 128 * 4 if use_scale else 0)
                  + (2 << 20))                               # slack
    assert vmem_bytes <= 56 * 2**20, (
        f"down_forward VMEM budget {vmem_bytes >> 20} MiB too large; "
        f"reduce block_bytes")

    cost = pl.CostEstimate(
        flops=int(2 * Rp * L * J),                           # MXU pairing matmul
        transcendentals=0,
        bytes_accessed=int((Rp * L + Rp * J + L * J) * itemsize
                           + (R * 4 if use_scale else 0)),
    )
    cparams = pltpu.CompilerParams(
        dimension_semantics=("parallel",),    # shards the row axis on v7x's 2 TCs
        vmem_limit_bytes=int(vmem_bytes),
    )

    x_spec = pl.BlockSpec((RB, L), lambda b: (b, 0))
    p_spec = pl.BlockSpec((L, J), lambda b: (0, 0))
    o_spec = pl.BlockSpec((RB, J), lambda b: (b, 0))
    out_shape = jax.ShapeDtypeStruct((Rp, J), dtype)

    if use_scale:
        # Dropout2d: whole (n, c) channel kept (scale 1/(1-p)) or zeroed.
        keep = jax.random.bernoulli(key, p=1.0 - drop_rate, shape=(NC,))
        chan_scale = keep.astype(jnp.float32) / (1.0 - drop_rate)
        # Per grouped-row scale column: R*4 bytes (~output_bytes / J, <1%).
        srows = jnp.repeat(chan_scale, HG)
        if Rp != R:
            srows = jnp.pad(srows, (0, Rp - R))
        srows = srows.reshape(Rp, 1)
        out = pl.pallas_call(
            _down_kernel_scaled,
            out_shape=out_shape,
            grid=(NB,),
            in_specs=[x_spec, p_spec, pl.BlockSpec((RB, 1), lambda b: (b, 0))],
            out_specs=o_spec,
            compiler_params=cparams,
            cost_estimate=cost,
        )(xf, p_mat, srows)
    else:
        out = pl.pallas_call(
            _down_kernel_plain,
            out_shape=out_shape,
            grid=(NB,),
            in_specs=[x_spec, p_spec],
            out_specs=o_spec,
            compiler_params=cparams,
            cost_estimate=cost,
        )(xf, p_mat)

    if Rp != R:
        out = out[:R]
    # Free reshape back to NCHW: (NC, HG, G*W2) flattens to (NC, H2, W2).
    return out.reshape(N, C, H2, W2)


if __name__ == "__main__":
    key = jax.random.PRNGKey(0)
    k_x, k_drop = jax.random.split(key)

    N, C, H, W = 2, 4, 16, 16
    drop_rate = 0.25          # matches Unet.drop_rate

    # Inputs quantized to a 0.25 grid in [-2, 2): every operand (and the 0.25
    # pairing weights) is exactly representable, so the correctness check is
    # bit-robust to whatever operand precision the MXU matmul uses.
    x = jax.random.randint(k_x, (N, C, H, W), -8, 8).astype(jnp.float32) / 4.0

    # training mode (dropout active)
    y = jax.block_until_ready(down_forward(x, drop_rate, k_drop, training=True))

    # pure-JAX reference with the same dropout mask
    keep = jax.random.bernoulli(k_drop, p=1.0 - drop_rate, shape=(N * C,))
    chan_scale = (keep.astype(jnp.float32) / (1.0 - drop_rate)).reshape(N, C, 1, 1)
    pooled = x.reshape(N, C, H // 2, 2, W // 2, 2).mean(axis=(3, 5))
    ref = pooled * chan_scale

    assert y.shape == (N, C, H // 2, W // 2)
    assert jnp.allclose(y, ref, atol=1e-6, rtol=1e-6)

    # eval mode (dropout is identity -> plain average pooling)
    y_eval = jax.block_until_ready(
        down_forward(x, drop_rate, k_drop, training=False))
    assert jnp.allclose(y_eval, pooled, atol=1e-6, rtol=1e-6)

    print("KERNEL_OK")
</pallas_src>

<mosaic_0001>
module attributes {stable_mosaic.version = 11 : i64} {
  func.func @_down_kernel_scaled(%arg0: i32, %arg1: memref<8x256xf32, #tpu.memory_space<vmem>>, %arg2: memref<256x64xf32, #tpu.memory_space<vmem>>, %arg3: memref<8x1xf32, #tpu.memory_space<vmem>>, %arg4: memref<8x64xf32, #tpu.memory_space<vmem>>) attributes {dimension_semantics = [#tpu.dimension_semantics<parallel>], iteration_bounds = array<i64: 1>, scalar_prefetch = 0 : i64, scratch_operands = 0 : i64, tpu.core_type = #tpu.core_type<tc>, window_params = [{transform_indices = @transform_0, window_bounds = array<i64: 8, 256>}, {pipeline_mode = #tpu.pipeline_mode<synchronous>, transform_indices = @transform_1, window_bounds = array<i64: 256, 64>}, {transform_indices = @transform_2, window_bounds = array<i64: 8, 1>}, {transform_indices = @transform_3, window_bounds = array<i64: 8, 64>}]} {
    %c0 = arith.constant 0 : index
    %c0_0 = arith.constant 0 : index
    %0 = vector.load %arg1[%c0, %c0_0] : memref<8x256xf32, #tpu.memory_space<vmem>>, vector<8x256xf32>
    %c0_1 = arith.constant 0 : index
    %c0_2 = arith.constant 0 : index
    %1 = vector.load %arg2[%c0_1, %c0_2] : memref<256x64xf32, #tpu.memory_space<vmem>>, vector<256x64xf32>
    %cst = arith.constant dense<0.000000e+00> : vector<8x64xf32>
    %2 = tpu.matmul %0, %1, %cst {dimension_numbers = #tpu.dot_dimension_numbers<[1], [0], [0], [1], [0, 0, 1, 1], [], []>} : vector<8x256xf32>, vector<256x64xf32>, vector<8x64xf32> -> vector<8x64xf32>
    %c0_3 = arith.constant 0 : index
    %c0_4 = arith.constant 0 : index
    %3 = vector.load %arg3[%c0_3, %c0_4] : memref<8x1xf32, #tpu.memory_space<vmem>>, vector<8x1xf32>
    %4 = vector.broadcast %3 : vector<8x1xf32> to vector<8x64xf32>
    %5 = arith.mulf %2, %4 : vector<8x64xf32>
    %c0_5 = arith.constant 0 : index
    %c0_6 = arith.constant 0 : index
    %6 = vector.load %arg4[%c0_5, %c0_6] : memref<8x64xf32, #tpu.memory_space<vmem>>, vector<8x64xf32>
    tpu.vector_store %arg4[%c0_5, %c0_6], %5 {strides = array<i32>} : memref<8x64xf32, #tpu.memory_space<vmem>>, vector<8x64xf32>,
    return
  }
  func.func @transform_0(%arg0: i32) -> (i32, i32) {
    %c0_i32 = arith.constant 0 : i32
    %c0_i32_0 = arith.constant 0 : i32
    return %arg0, %c0_i32 : i32, i32
  }
  func.func @transform_1(%arg0: i32) -> (i32, i32) {
    %c0_i32 = arith.constant 0 : i32
    %c0_i32_0 = arith.constant 0 : i32
    %c0_i32_1 = arith.constant 0 : i32
    return %c0_i32, %c0_i32_0 : i32, i32
  }
  func.func @transform_2(%arg0: i32) -> (i32, i32) {
    %c0_i32 = arith.constant 0 : i32
    %c0_i32_0 = arith.constant 0 : i32
    return %arg0, %c0_i32 : i32, i32
  }
  func.func @transform_3(%arg0: i32) -> (i32, i32) {
    %c0_i32 = arith.constant 0 : i32
    %c0_i32_0 = arith.constant 0 : i32
    return %arg0, %c0_i32 : i32, i32
  }
}

</mosaic_0001>

<llo_original>
// kernel: tpu_custom_call.1
$region0: #{tpu_custom_call.1}
  #allocation0 [shape = 'u32[]', space=smem, size = 0x4, offset = 0x4, fixed_abs, tag = 'smem constant byte address 0x4 - core index']
  #allocation1 [shape = 'u32[144,128]{1,0:T(1,128)}', space=vmem, size = 0x12000, scoped, tag = 'internal scratch']
  %s0 = inlined_call_operand.vmem [shape: f32[8,256], index: 0, kind: input, shape index: {}]
  %s1 = inlined_call_operand.vmem [shape: f32[256,64], index: 1, kind: input, shape index: {}]
  %s2 = inlined_call_operand.vmem [shape: f32[8,1], index: 2, kind: input, shape index: {}]
  %s3 = inlined_call_operand.hbm [shape: f32[8,64], index: 3, kind: output, shape index: {}]
  %s4 = sld [smem:[#allocation0]]
  $region22: #{tpu_custom_call.1} parent=0
    _
  %s6 = ssub.s32 1, %s4
  %s7 = scalar_select 0, %s6, %s4
  $region1: #{tpu_custom_call.1} parent=0
    #allocation2 [shape = 'u8[4096]{0}', space=vmem, size = 0x1000, scoped, tag = 'output window, operand 0, single buffered']
    #allocation3 [shape = 's32[1]{0}', space=sflag, size = 0x4, scoped, tag = 'scoped memory for tpu_custom_call.1']
    %8 = vsyncpa [#allocation3], 0
    // Predicated region
    $region2: #{tpu_custom_call.1} parent=1 // pred_check
      _
    $region3: #{tpu_custom_call.1} parent=1 // pred_check_branch
      %10 = sbr.rel (0) target = $region5
    $region4: #{tpu_custom_call.1} parent=1 // pred_region
      _
    $region5: #{tpu_custom_call.1} parent=1 // pred_fallthru
      _
    // Predicated region
    $region6: #{tpu_custom_call.1} parent=1 // pred_check
      _
    $region7: #{tpu_custom_call.1} parent=1 // pred_check_branch
      %12 = sbr.rel (0) target = $region9
    $region8: #{tpu_custom_call.1} parent=1 // pred_region
      _
    $region9: #{tpu_custom_call.1} parent=1 // pred_fallthru
      _
    // Predicated region
    $region10: #{tpu_custom_call.1} parent=1 // pred_check
      _
    $region11: #{tpu_custom_call.1} parent=1 // pred_check_branch
      %14 = sbr.rel (0) target = $region13
    $region12: #{tpu_custom_call.1} parent=1 // pred_region
      _
    $region13: #{tpu_custom_call.1} parent=1 // pred_fallthru
      _
    %v15 = vld [vmem:[%s0] sm:$0xff]
    %v16 = vld [vmem:[%s0 + $0x8] sm:$0xff]
    %v17 = vld [vmem:[%s1] sm:$0xff]
    %v18 = vld [vmem:[%s1 + $0x8] sm:$0xff]
    %v19 = vld [vmem:[%s1 + $0x10] sm:$0xff]
    %v20 = vld [vmem:[%s1 + $0x18] sm:$0xff]
    %v21 = vld [vmem:[%s1 + $0x20] sm:$0xff]
    %v22 = vld [vmem:[%s1 + $0x28] sm:$0xff]
    %v23 = vld [vmem:[%s1 + $0x30] sm:$0xff]
    %v24 = vld [vmem:[%s1 + $0x38] sm:$0xff]
    %v25 = vld [vmem:[%s1 + $0x40] sm:$0xff]
    %v26 = vld [vmem:[%s1 + $0x48] sm:$0xff]
    %v27 = vld [vmem:[%s1 + $0x50] sm:$0xff]
    %v28 = vld [vmem:[%s1 + $0x58] sm:$0xff]
    %v29 = vld [vmem:[%s1 + $0x60] sm:$0xff]
    %v30 = vld [vmem:[%s1 + $0x68] sm:$0xff]
    %v31 = vld [vmem:[%s1 + $0x70] sm:$0xff]
    %v32 = vld [vmem:[%s1 + $0x78] sm:$0xff]
    %v33 = vld [vmem:[%s1 + $0x80] sm:$0xff]
    %v34 = vld [vmem:[%s1 + $0x88] sm:$0xff]
    %v35 = vld [vmem:[%s1 + $0x90] sm:$0xff]
    %v36 = vld [vmem:[%s1 + $0x98] sm:$0xff]
    %v37 = vld [vmem:[%s1 + $0xa0] sm:$0xff]
    %v38 = vld [vmem:[%s1 + $0xa8] sm:$0xff]
    %v39 = vld [vmem:[%s1 + $0xb0] sm:$0xff]
    %v40 = vld [vmem:[%s1 + $0xb8] sm:$0xff]
    %v41 = vld [vmem:[%s1 + $0xc0] sm:$0xff]
    %v42 = vld [vmem:[%s1 + $0xc8] sm:$0xff]
    %v43 = vld [vmem:[%s1 + $0xd0] sm:$0xff]
    %v44 = vld [vmem:[%s1 + $0xd8] sm:$0xff]
    %v45 = vld [vmem:[%s1 + $0xe0] sm:$0xff]
    %v46 = vld [vmem:[%s1 + $0xe8] sm:$0xff]
    %v47 = vld [vmem:[%s1 + $0xf0] sm:$0xff]
    %v48 = vld [vmem:[%s1 + $0xf8] sm:$0xff]
    %49 = vmatprep.subr.mxu0 0.0
    %50 = vmatpush1.msra.mxu0 %v32
    %51 = vmatprep.subr.mxu0 0.0
    %52 = vmatpush1.msra.mxu0 %v31
    %53 = vmatprep.subr.mxu0 0.0
    %54 = vmatpush1.msra.mxu0 %v30
    %55 = vmatprep.subr.mxu0 0.0
    %56 = vmatpush1.msra.mxu0 %v29
    %57 = vmatprep.subr.mxu0 0.0
    %58 = vmatpush1.msra.mxu0 %v28
    %59 = vmatprep.subr.mxu0 0.0
    %60 = vmatpush1.msra.mxu0 %v27
    %61 = vmatprep.subr.mxu0 0.0
    %62 = vmatpush1.msra.mxu0 %v26
    %63 = vmatprep.subr.mxu0 0.0
    %64 = vmatpush1.msra.mxu0 %v25
    %65 = vmatprep.subr.mxu0 0.0
    %66 = vmatpush1.msra.mxu0 %v24
    %67 = vmatprep.subr.mxu0 0.0
    %68 = vmatpush1.msra.mxu0 %v23
    %69 = vmatprep.subr.mxu0 0.0
    %70 = vmatpush1.msra.mxu0 %v22
    %71 = vmatprep.subr.mxu0 0.0
    %72 = vmatpush1.msra.mxu0 %v21
    %73 = vmatprep.subr.mxu0 0.0
    %74 = vmatpush1.msra.mxu0 %v20
    %75 = vmatprep.subr.mxu0 0.0
    %76 = vmatpush1.msra.mxu0 %v19
    %77 = vmatprep.subr.mxu0 0.0
    %78 = vmatpush1.msra.mxu0 %v18
    %79 = vmatprep.subr.mxu0 0.0
    %80 = vmatpush1.msra.mxu0 %v17
    %81 = vmatprep.subr.mxu0 0.0
    %82 = vmatpush2.msra.mxu0 %v48
    %83 = vmatprep.subr.mxu0 0.0
    %84 = vmatpush2.msra.mxu0 %v47
    %85 = vmatprep.subr.mxu0 0.0
    %86 = vmatpush2.msra.mxu0 %v46
    %87 = vmatprep.subr.mxu0 0.0
    %88 = vmatpush2.msra.mxu0 %v45
    %89 = vmatprep.subr.mxu0 0.0
    %90 = vmatpush2.msra.mxu0 %v44
    %91 = vmatprep.subr.mxu0 0.0
    %92 = vmatpush2.msra.mxu0 %v43
    %93 = vmatprep.subr.mxu0 0.0
    %94 = vmatpush2.msra.mxu0 %v42
    %95 = vmatprep.subr.mxu0 0.0
    %96 = vmatpush2.msra.mxu0 %v41
    %97 = vmatprep.subr.mxu0 0.0
    %98 = vmatpush2.msra.mxu0 %v40
    %99 = vmatprep.subr.mxu0 0.0
    %100 = vmatpush2.msra.mxu0 %v39
    %101 = vmatprep.subr.mxu0 0.0
    %102 = vmatpush2.msra.mxu0 %v38
    %103 = vmatprep.subr.mxu0 0.0
    %104 = vmatpush2.msra.mxu0 %v37
    %105 = vmatprep.subr.mxu0 0.0
    %106 = vmatpush2.msra.mxu0 %v36
    %107 = vmatprep.subr.mxu0 0.0
    %108 = vmatpush2.msra.mxu0 %v35
    %109 = vmatprep.subr.mxu0 0.0
    %110 = vmatpush2.msra.mxu0 %v34
    %111 = vmatprep.subr.mxu0 0.0
    %112 = vmatpush2.msra.mxu0 %v33
    %113 = vmatprep.mubr.f32.mxu0 %v16
    %114 = vmatmul.mubr.f32.gmra.mxu0 %v15
    %v115 = vpop.f32.mrf.mxu0
    %v116 = vadd.f32 0.0, %v115
    %v117 = vpop.f32.mrf.mxu0
    %118 = vdwg.mxu0
    %v119 = vld [vmem:[%s2] sm:$0xff]
    %121 = vset.pattern.permute.xlu0 0
    %122 = vperm.xlu0 %121, %v119
    %v123 = vpop.permute.xlu0 %122
    %v125 = vmul.f32 %v116, %v123
    %vm126 = vcmask 523264
    %127 = vst.msk [vmem:[#allocation2] sm:$0xff] %vm126, %v125
    // Predicated region
    $region14: #{tpu_custom_call.1} parent=1 // pred_check
      _
    $region15: #{tpu_custom_call.1} parent=1 // pred_check_branch
      %129 = sbr.rel (0) target = $region17
    $region16: #{tpu_custom_call.1} parent=1 // pred_region
      %s131 = ssub.s32 128, 128
      %132 = vsyncadd [#allocation3], %s131
      %s134 = sshll.u32 [#allocation2], 4
      %s135 = int_to_ptr.vmem [resolvable:$true] %s134
      %137 = dma.vmem_to_hbm [thread:$0]  %s135, 128, %s3, [#allocation3]
    $region17: #{tpu_custom_call.1} parent=1 // pred_fallthru
      _
    // Predicated region
    $region18: #{tpu_custom_call.1} parent=1 // pred_check
      _
    $region19: #{tpu_custom_call.1} parent=1 // pred_check_branch
      %139 = sbr.rel (0) target = $region21
    $region20: #{tpu_custom_call.1} parent=1 // pred_region
      %140 = dma.done [#allocation3], 128
    $region21: #{tpu_custom_call.1} parent=1 // pred_fallthru
      _
    %141 = vsyncpa [#allocation3], 1

</llo_original>
